<compile_context>
chip_gen: v7x
topology: tpu7x:2x2x1
jax: 0.10.0
libtpu: 0.0.40
codegen_flags: <defaults>
</compile_context>

<pallas_src>
import functools

import jax
import jax.numpy as jnp
from jax.experimental import pallas as pl
from jax.experimental.pallas import tpu as pltpu

LANE = 128          # lane width: pad feature-like dims so vregs / stores are lane-dense
SUBLANE_BF16 = 16   # bf16 sublane packing: pad the graph dim so pooled tiles are full


def _pad_axis(x, axis, multiple):
    """Zero-pad `axis` of x up to a multiple.  The exactness of slicing the real
    outputs back out relies on the padding being exactly zero (zero weight
    columns/rows + zero bias entries + relu(0)=0 propagate zeros)."""
    size = x.shape[axis]
    pad = (-size) % multiple
    if pad == 0:
        return x
    widths = [(0, 0)] * x.ndim
    widths[axis] = (0, pad)
    return jnp.pad(x, widths)


# --------------------------- fused kernel ----------------------------------

def gnn_forward_kernel(a_ref, x_ref, pa_ref,
                       w1_ref, b1_ref, w2_ref, b2_ref, w3_ref, b3_ref,
                       wf1_ref, bf1_ref, wf2_ref, bf2_ref,
                       out_ref, *, aggregate_first):
    f32 = jnp.float32
    bf16 = jnp.bfloat16

    a = a_ref[...]            # [N, N]      bf16 normalized adjacency (self loops)
    x = x_ref[...]            # [N, F0p]    bf16 node features (lane-padded)

    # ---- GCNConv 1: relu(A @ X @ W1 + b1) --------------------------------
    # Contract the N^2 term over the narrower padded width of {F0p, Hp}.
    if aggregate_first:
        h = jnp.dot(a, x, preferred_element_type=f32)                     # [N, F0p]
        h = jnp.dot(h.astype(bf16), w1_ref[...], preferred_element_type=f32)
    else:
        h = jnp.dot(x, w1_ref[...], preferred_element_type=f32)           # [N, Hp]
        h = jnp.dot(a, h.astype(bf16), preferred_element_type=f32)
    h = jnp.maximum(h + b1_ref[...], 0.0).astype(bf16)                    # f32 bias/relu

    # ---- GCNConv 2: relu(A @ (H @ W2) + b2) ------------------------------
    t = jnp.dot(h, w2_ref[...], preferred_element_type=f32)
    h = jnp.dot(a, t.astype(bf16), preferred_element_type=f32)
    h = jnp.maximum(h + b2_ref[...], 0.0).astype(bf16)

    # ---- GCNConv 3 + global_mean_pool, folded ----------------------------
    # g = (P @ A) @ (H @ W3) + rowsum(P) * b3 ; PA / scaled bias precomputed.
    t = jnp.dot(h, w3_ref[...], preferred_element_type=f32)               # [N, Hp]
    g = jnp.dot(pa_ref[...], t.astype(bf16), preferred_element_type=f32)  # [Gp, Hp]
    g = g + b3_ref[...]                                                   # [Gp, Hp] f32

    # ---- fc1 + relu, fc2 -------------------------------------------------
    f = jnp.dot(g.astype(bf16), wf1_ref[...], preferred_element_type=f32) + bf1_ref[...]
    f = jnp.maximum(f, 0.0)
    out_ref[...] = (jnp.dot(f.astype(bf16), wf2_ref[...], preferred_element_type=f32)
                    + bf2_ref[...])


# --------------------- one-time constant preparation -----------------------

def prepare_gnn(a_hat, pool, params):
    """Hoisted per-model prep: fold pooling into conv3, zero-pad feature/graph
    dims, cast matmul operands to bf16.  Run once; the per-call path only pads
    and casts X."""
    (w1, b1, w2, b2, w3, b3, wf1, bf1, wf2, bf2) = params
    num_graphs = pool.shape[0]
    out_features = wf2.shape[1]

    # Pad the graph dim so pooled / output tiles are full (16,128) bf16 tiles.
    pool_p = _pad_axis(pool, 0, SUBLANE_BF16)                  # zero rows for pad graphs

    # Fold the pooling matrix into GCNConv3 (removes one NxNxH matmul).
    pa = jnp.dot(pool_p, a_hat)                                # [Gp, N]
    b3_eff = jnp.sum(pool_p, axis=1, keepdims=True) * b3       # [Gp, H]; 0 for pad rows

    # Zero-pad F0 / hidden / FC / output dims to 128 lanes (exact: zero weights,
    # zero bias, relu(0)=0 propagate zeros; the wrapper slices real rows/cols).
    pad = functools.partial(_pad_axis, multiple=LANE)
    w1p, b1p = pad(pad(w1, 0), 1), pad(b1, 1)                  # rows padded with F0
    w2p, b2p = pad(pad(w2, 0), 1), pad(b2, 1)
    w3p, b3p = pad(pad(w3, 0), 1), pad(b3_eff, 1)
    wf1p, bf1p = pad(pad(wf1, 0), 1), pad(bf1, 1)
    wf2p, bf2p = pad(pad(wf2, 0), 1), pad(bf2, 1)

    # bf16 matmul operands, f32 accumulation; biases stay f32.
    # (bf16 adjacency/features diverge ~1e-2 rel. from an f32 reference on
    #  deep/high-degree graphs; keep a_hat in f32 if exactness matters.)
    to_bf16 = lambda t: t.astype(jnp.bfloat16)
    consts = dict(
        a=to_bf16(a_hat), pa=to_bf16(pa),
        w1=to_bf16(w1p), b1=b1p,
        w2=to_bf16(w2p), b2=b2p,
        w3=to_bf16(w3p), b3=b3p,
        wf1=to_bf16(wf1p), bf1=bf1p,
        wf2=to_bf16(wf2p), bf2=bf2p,
    )
    meta = dict(
        num_graphs=num_graphs,
        out_features=out_features,
        f0_padded=w1p.shape[0],
        hidden_padded=w1p.shape[1],
        out_padded=wf2p.shape[1],
        g_padded=pool_p.shape[0],
    )
    return consts, meta


# ------------------------------ forward ------------------------------------

def gnn_forward(consts, x, *, meta):
    """Per-call path: pad/cast X, run the fused kernel, slice real outputs."""
    x_bf = _pad_axis(x, 1, LANE).astype(jnp.bfloat16)          # lane-dense conv-1

    # Decide on PADDED widths: contract the N^2 term over the narrower one.
    aggregate_first = meta["f0_padded"] <= meta["hidden_padded"]
    kernel = functools.partial(gnn_forward_kernel, aggregate_first=aggregate_first)
    vmem_spec = pl.BlockSpec(memory_space=pltpu.MemorySpace.VMEM)

    # 48 MiB leaves headroom on every generation at these sizes.  At larger N,
    # raise toward ~96-110 MiB on v5e/v6e (128 MiB physical; v5e scoped default
    # is only 16 MiB so the explicit limit is essential), but keep <=48 MiB and
    # tile A on v7x (64 MiB physical).
    out = pl.pallas_call(
        kernel,
        out_shape=jax.ShapeDtypeStruct((meta["g_padded"], meta["out_padded"]),
                                       jnp.float32),
        in_specs=[vmem_spec] * 13,
        out_specs=vmem_spec,
        compiler_params=pltpu.CompilerParams(
            vmem_limit_bytes=48 * 1024 * 1024),
    )(consts["a"], x_bf, consts["pa"],
      consts["w1"], consts["b1"], consts["w2"], consts["b2"],
      consts["w3"], consts["b3"],
      consts["wf1"], consts["bf1"], consts["wf2"], consts["bf2"])
    return out[:meta["num_graphs"], :meta["out_features"]]


# ------------------------- plain-JAX glue ----------------------------------

def build_normalized_adjacency(edge_index, num_nodes):
    """Dense GCN adjacency D^{-1/2}(A + I)D^{-1/2}, matching PyG gcn_norm:
    duplicate edges accumulate and self loops are only added for nodes that
    do not already have one (add_remaining_self_loops semantics)."""
    src, dst = edge_index[0], edge_index[1]
    a = jnp.zeros((num_nodes, num_nodes), jnp.float32)
    a = a.at[dst, src].add(1.0)
    diag = jnp.diagonal(a)
    a = a + jnp.diag(jnp.where(diag == 0.0, 1.0, 0.0))
    deg = jnp.sum(a, axis=1)
    dinv = jnp.where(deg > 0, 1.0 / jnp.sqrt(deg), 0.0)
    return a * dinv[:, None] * dinv[None, :]


def build_mean_pool_matrix(batch, num_graphs):
    onehot = (batch[None, :] == jnp.arange(num_graphs)[:, None]).astype(jnp.float32)
    counts = jnp.sum(onehot, axis=1, keepdims=True)
    return onehot / jnp.maximum(counts, 1.0)


def init_params(key, num_node_features, hidden_channels, output_features):
    def linear(k, fan_in, fan_out):
        kw, kb = jax.random.split(k)
        scale = 1.0 / jnp.sqrt(jnp.float32(fan_in))
        w = jax.random.uniform(kw, (fan_in, fan_out), jnp.float32, -scale, scale)
        b = jax.random.uniform(kb, (1, fan_out), jnp.float32, -scale, scale)
        return w, b

    keys = jax.random.split(key, 5)
    w1, b1 = linear(keys[0], num_node_features, hidden_channels)
    w2, b2 = linear(keys[1], hidden_channels, hidden_channels)
    w3, b3 = linear(keys[2], hidden_channels, hidden_channels)
    wf1, bf1 = linear(keys[3], hidden_channels, 64)
    wf2, bf2 = linear(keys[4], 64, output_features)
    return (w1, b1, w2, b2, w3, b3, wf1, bf1, wf2, bf2)


if __name__ == "__main__":
    key = jax.random.PRNGKey(0)
    k_params, k_x = jax.random.split(key)

    num_nodes = 16
    num_node_features = 8
    hidden_channels = 32
    output_features = 4
    num_graphs = 2
    nodes_per_graph = num_nodes // num_graphs

    # Node features.
    x = jax.random.normal(k_x, (num_nodes, num_node_features), jnp.float32)

    # Deterministic edge_index: bidirectional ring within each graph.
    edges = []
    for g in range(num_graphs):
        base = g * nodes_per_graph
        for i in range(nodes_per_graph):
            j = (i + 1) % nodes_per_graph
            edges.append((base + i, base + j))
            edges.append((base + j, base + i))
    edge_index = jnp.array(edges, dtype=jnp.int32).T            # [2, E]

    # Batch assignment vector.
    batch = jnp.repeat(jnp.arange(num_graphs, dtype=jnp.int32), nodes_per_graph)

    a_hat = build_normalized_adjacency(edge_index, num_nodes)   # [N, N]
    pool = build_mean_pool_matrix(batch, num_graphs)            # [G, N]
    params = init_params(k_params, num_node_features, hidden_channels,
                         output_features)

    # One-time prep (padding / bf16 casts / pooling fold), then the jitted
    # forward only pads+casts X and launches the fused kernel.
    consts, meta = prepare_gnn(a_hat, pool, params)
    forward = jax.jit(functools.partial(gnn_forward, meta=meta))

    out = forward(consts, x)
    jax.block_until_ready(out)
    assert out.shape == (num_graphs, output_features)
    print("KERNEL_OK")
</pallas_src>

<mosaic_0001>
module attributes {stable_mosaic.version = 11 : i64} {
  func.func @gnn_forward_kernel(%arg0: memref<16x16xbf16, #tpu.memory_space<vmem>>, %arg1: memref<16x128xbf16, #tpu.memory_space<vmem>>, %arg2: memref<16x16xbf16, #tpu.memory_space<vmem>>, %arg3: memref<128x128xbf16, #tpu.memory_space<vmem>>, %arg4: memref<1x128xf32, #tpu.memory_space<vmem>>, %arg5: memref<128x128xbf16, #tpu.memory_space<vmem>>, %arg6: memref<1x128xf32, #tpu.memory_space<vmem>>, %arg7: memref<128x128xbf16, #tpu.memory_space<vmem>>, %arg8: memref<16x128xf32, #tpu.memory_space<vmem>>, %arg9: memref<128x128xbf16, #tpu.memory_space<vmem>>, %arg10: memref<1x128xf32, #tpu.memory_space<vmem>>, %arg11: memref<128x128xbf16, #tpu.memory_space<vmem>>, %arg12: memref<1x128xf32, #tpu.memory_space<vmem>>, %arg13: memref<16x128xf32, #tpu.memory_space<vmem>>) attributes {dimension_semantics = [], scalar_prefetch = 0 : i64, scratch_operands = 0 : i64, tpu.core_type = #tpu.core_type<tc>} {
    %c0 = arith.constant 0 : index
    %c0_0 = arith.constant 0 : index
    %0 = vector.load %arg0[%c0, %c0_0] : memref<16x16xbf16, #tpu.memory_space<vmem>>, vector<16x16xbf16>
    %c0_1 = arith.constant 0 : index
    %c0_2 = arith.constant 0 : index
    %1 = vector.load %arg1[%c0_1, %c0_2] : memref<16x128xbf16, #tpu.memory_space<vmem>>, vector<16x128xbf16>
    %cst = arith.constant dense<0.000000e+00> : vector<16x128xf32>
    %2 = tpu.matmul %0, %1, %cst {dimension_numbers = #tpu.dot_dimension_numbers<[1], [0], [0], [1], [0, 0, 1, 1], [], []>} : vector<16x16xbf16>, vector<16x128xbf16>, vector<16x128xf32> -> vector<16x128xf32>
    %3 = arith.truncf %2 : vector<16x128xf32> to vector<16x128xbf16>
    %c0_3 = arith.constant 0 : index
    %c0_4 = arith.constant 0 : index
    %4 = vector.load %arg3[%c0_3, %c0_4] : memref<128x128xbf16, #tpu.memory_space<vmem>>, vector<128x128xbf16>
    %cst_5 = arith.constant dense<0.000000e+00> : vector<16x128xf32>
    %5 = tpu.matmul %3, %4, %cst_5 {dimension_numbers = #tpu.dot_dimension_numbers<[1], [0], [0], [1], [0, 0, 1, 1], [], []>} : vector<16x128xbf16>, vector<128x128xbf16>, vector<16x128xf32> -> vector<16x128xf32>
    %c0_6 = arith.constant 0 : index
    %c0_7 = arith.constant 0 : index
    %6 = vector.load %arg4[%c0_6, %c0_7] : memref<1x128xf32, #tpu.memory_space<vmem>>, vector<1x128xf32>
    %7 = vector.broadcast %6 : vector<1x128xf32> to vector<16x128xf32>
    %8 = arith.addf %5, %7 : vector<16x128xf32>
    %cst_8 = arith.constant 0.000000e+00 : f32
    %9 = vector.broadcast %cst_8 : f32 to vector<16x128xf32>
    %10 = arith.maximumf %8, %9 : vector<16x128xf32>
    %11 = arith.truncf %10 : vector<16x128xf32> to vector<16x128xbf16>
    %c0_9 = arith.constant 0 : index
    %c0_10 = arith.constant 0 : index
    %12 = vector.load %arg5[%c0_9, %c0_10] : memref<128x128xbf16, #tpu.memory_space<vmem>>, vector<128x128xbf16>
    %cst_11 = arith.constant dense<0.000000e+00> : vector<16x128xf32>
    %13 = tpu.matmul %11, %12, %cst_11 {dimension_numbers = #tpu.dot_dimension_numbers<[1], [0], [0], [1], [0, 0, 1, 1], [], []>} : vector<16x128xbf16>, vector<128x128xbf16>, vector<16x128xf32> -> vector<16x128xf32>
    %14 = arith.truncf %13 : vector<16x128xf32> to vector<16x128xbf16>
    %cst_12 = arith.constant dense<0.000000e+00> : vector<16x128xf32>
    %15 = tpu.matmul %0, %14, %cst_12 {dimension_numbers = #tpu.dot_dimension_numbers<[1], [0], [0], [1], [0, 0, 1, 1], [], []>} : vector<16x16xbf16>, vector<16x128xbf16>, vector<16x128xf32> -> vector<16x128xf32>
    %c0_13 = arith.constant 0 : index
    %c0_14 = arith.constant 0 : index
    %16 = vector.load %arg6[%c0_13, %c0_14] : memref<1x128xf32, #tpu.memory_space<vmem>>, vector<1x128xf32>
    %17 = vector.broadcast %16 : vector<1x128xf32> to vector<16x128xf32>
    %18 = arith.addf %15, %17 : vector<16x128xf32>
    %cst_15 = arith.constant 0.000000e+00 : f32
    %19 = vector.broadcast %cst_15 : f32 to vector<16x128xf32>
    %20 = arith.maximumf %18, %19 : vector<16x128xf32>
    %21 = arith.truncf %20 : vector<16x128xf32> to vector<16x128xbf16>
    %c0_16 = arith.constant 0 : index
    %c0_17 = arith.constant 0 : index
    %22 = vector.load %arg7[%c0_16, %c0_17] : memref<128x128xbf16, #tpu.memory_space<vmem>>, vector<128x128xbf16>
    %cst_18 = arith.constant dense<0.000000e+00> : vector<16x128xf32>
    %23 = tpu.matmul %21, %22, %cst_18 {dimension_numbers = #tpu.dot_dimension_numbers<[1], [0], [0], [1], [0, 0, 1, 1], [], []>} : vector<16x128xbf16>, vector<128x128xbf16>, vector<16x128xf32> -> vector<16x128xf32>
    %c0_19 = arith.constant 0 : index
    %c0_20 = arith.constant 0 : index
    %24 = vector.load %arg2[%c0_19, %c0_20] : memref<16x16xbf16, #tpu.memory_space<vmem>>, vector<16x16xbf16>
    %25 = arith.truncf %23 : vector<16x128xf32> to vector<16x128xbf16>
    %cst_21 = arith.constant dense<0.000000e+00> : vector<16x128xf32>
    %26 = tpu.matmul %24, %25, %cst_21 {dimension_numbers = #tpu.dot_dimension_numbers<[1], [0], [0], [1], [0, 0, 1, 1], [], []>} : vector<16x16xbf16>, vector<16x128xbf16>, vector<16x128xf32> -> vector<16x128xf32>
    %c0_22 = arith.constant 0 : index
    %c0_23 = arith.constant 0 : index
    %27 = vector.load %arg8[%c0_22, %c0_23] : memref<16x128xf32, #tpu.memory_space<vmem>>, vector<16x128xf32>
    %28 = arith.addf %26, %27 : vector<16x128xf32>
    %29 = arith.truncf %28 : vector<16x128xf32> to vector<16x128xbf16>
    %c0_24 = arith.constant 0 : index
    %c0_25 = arith.constant 0 : index
    %30 = vector.load %arg9[%c0_24, %c0_25] : memref<128x128xbf16, #tpu.memory_space<vmem>>, vector<128x128xbf16>
    %cst_26 = arith.constant dense<0.000000e+00> : vector<16x128xf32>
    %31 = tpu.matmul %29, %30, %cst_26 {dimension_numbers = #tpu.dot_dimension_numbers<[1], [0], [0], [1], [0, 0, 1, 1], [], []>} : vector<16x128xbf16>, vector<128x128xbf16>, vector<16x128xf32> -> vector<16x128xf32>
    %c0_27 = arith.constant 0 : index
    %c0_28 = arith.constant 0 : index
    %32 = vector.load %arg10[%c0_27, %c0_28] : memref<1x128xf32, #tpu.memory_space<vmem>>, vector<1x128xf32>
    %33 = vector.broadcast %32 : vector<1x128xf32> to vector<16x128xf32>
    %34 = arith.addf %31, %33 : vector<16x128xf32>
    %cst_29 = arith.constant 0.000000e+00 : f32
    %35 = vector.broadcast %cst_29 : f32 to vector<16x128xf32>
    %36 = arith.maximumf %34, %35 : vector<16x128xf32>
    %37 = arith.truncf %36 : vector<16x128xf32> to vector<16x128xbf16>
    %c0_30 = arith.constant 0 : index
    %c0_31 = arith.constant 0 : index
    %38 = vector.load %arg11[%c0_30, %c0_31] : memref<128x128xbf16, #tpu.memory_space<vmem>>, vector<128x128xbf16>
    %cst_32 = arith.constant dense<0.000000e+00> : vector<16x128xf32>
    %39 = tpu.matmul %37, %38, %cst_32 {dimension_numbers = #tpu.dot_dimension_numbers<[1], [0], [0], [1], [0, 0, 1, 1], [], []>} : vector<16x128xbf16>, vector<128x128xbf16>, vector<16x128xf32> -> vector<16x128xf32>
    %c0_33 = arith.constant 0 : index
    %c0_34 = arith.constant 0 : index
    %40 = vector.load %arg12[%c0_33, %c0_34] : memref<1x128xf32, #tpu.memory_space<vmem>>, vector<1x128xf32>
    %41 = vector.broadcast %40 : vector<1x128xf32> to vector<16x128xf32>
    %42 = arith.addf %39, %41 : vector<16x128xf32>
    %c0_35 = arith.constant 0 : index
    %c0_36 = arith.constant 0 : index
    %43 = vector.load %arg13[%c0_35, %c0_36] : memref<16x128xf32, #tpu.memory_space<vmem>>, vector<16x128xf32>
    tpu.vector_store %arg13[%c0_35, %c0_36], %42 {strides = array<i32>} : memref<16x128xf32, #tpu.memory_space<vmem>>, vector<16x128xf32>,
    return
  }
}

</mosaic_0001>

<llo_original>
// kernel: gnn_forward.1
$region0: #{gnn_forward.1}
  #allocation0 [shape = 'u32[]', space=smem, size = 0x4, offset = 0x4, fixed_abs, tag = 'smem constant byte address 0x4 - core index']
  #allocation1 [shape = 'u32[144,128]{1,0:T(1,128)}', space=vmem, size = 0x12000, scoped, tag = 'internal scratch']
  %s0 = inlined_call_operand.hbm [shape: bf16[16,16], index: 0, kind: input, shape index: {}]
  %s1 = inlined_call_operand.vmem [shape: bf16[16,128], index: 1, kind: input, shape index: {}]
  %s2 = inlined_call_operand.hbm [shape: bf16[16,16], index: 2, kind: input, shape index: {}]
  %s3 = inlined_call_operand.vmem [shape: bf16[128,128], index: 3, kind: input, shape index: {}]
  %s4 = inlined_call_operand.vmem [shape: f32[1,128], index: 4, kind: input, shape index: {}]
  %s5 = inlined_call_operand.hbm [shape: bf16[128,128], index: 5, kind: input, shape index: {}]
  %s6 = inlined_call_operand.vmem [shape: f32[1,128], index: 6, kind: input, shape index: {}]
  %s7 = inlined_call_operand.hbm [shape: bf16[128,128], index: 7, kind: input, shape index: {}]
  %s8 = inlined_call_operand.hbm [shape: f32[16,128], index: 8, kind: input, shape index: {}]
  %s9 = inlined_call_operand.hbm [shape: bf16[128,128], index: 9, kind: input, shape index: {}]
  %s10 = inlined_call_operand.vmem [shape: f32[1,128], index: 10, kind: input, shape index: {}]
  %s11 = inlined_call_operand.hbm [shape: bf16[128,128], index: 11, kind: input, shape index: {}]
  %s12 = inlined_call_operand.hbm [shape: f32[1,128], index: 12, kind: input, shape index: {}]
  %s13 = inlined_call_operand.vmem [shape: f32[16,128], index: 13, kind: output, shape index: {}]
  %s14 = sld [smem:[#allocation0]]
  $region94: #{gnn_forward.1} parent=0
    _
  %s16 = ssub.s32 1, %s14
  %s17 = scalar_select 0, %s16, %s14
  $region1: #{gnn_forward.1} parent=0
    #allocation2 [shape = 'u8[4096]{0}', space=vmem, size = 0x1000, scoped, tag = 'input window, operand 0, single buffered']
    #allocation3 [shape = 's32[1]{0}', space=sflag, size = 0x4, scoped, tag = 'scoped memory for gnn_forward.1']
    #allocation4 [shape = 'u8[4096]{0}', space=vmem, size = 0x1000, scoped, tag = 'input window, operand 2, single buffered']
    #allocation5 [shape = 's32[1]{0}', space=sflag, size = 0x4, scoped, tag = 'scoped memory for gnn_forward.1']
    #allocation6 [shape = 'u8[32768]{0}', space=vmem, size = 0x8000, scoped, tag = 'input window, operand 5, single buffered']
    #allocation7 [shape = 'u8[32768]{0}', space=vmem, size = 0x8000, scoped, tag = 'input window, operand 7, single buffered']
    #allocation8 [shape = 's32[1]{0}', space=sflag, size = 0x4, scoped, tag = 'scoped memory for gnn_forward.1']
    #allocation9 [shape = 'u8[8192]{0}', space=vmem, size = 0x2000, scoped, tag = 'input window, operand 8, single buffered']
    #allocation10 [shape = 'u8[32768]{0}', space=vmem, size = 0x8000, scoped, tag = 'input window, operand 9, single buffered']
    #allocation11 [shape = 's32[1]{0}', space=sflag, size = 0x4, scoped, tag = 'scoped memory for gnn_forward.1']
    #allocation12 [shape = 'u8[32768]{0}', space=vmem, size = 0x8000, scoped, tag = 'input window, operand 11, single buffered']
    #allocation13 [shape = 'u8[512]{0}', space=vmem, size = 0x400, scoped, tag = 'input window, operand 12, single buffered']
    #allocation14 [shape = 's32[1]{0}', space=sflag, size = 0x4, scoped, tag = 'scoped memory for gnn_forward.1']
    %18 = vsyncpa [#allocation3], 0
    %19 = vsyncpa [#allocation5], 0
    %20 = vsyncpa [#allocation8], 0
    %21 = vsyncpa [#allocation11], 0
    %22 = vsyncpa [#allocation14], 0
    // Predicated region
    $region2: #{gnn_forward.1} parent=1 // pred_check
      _
    $region3: #{gnn_forward.1} parent=1 // pred_check_branch
      %24 = sbr.rel (0) target = $region5
    $region4: #{gnn_forward.1} parent=1 // pred_region
      %s26 = ssub.s32 128, 128
      %27 = vsyncadd [#allocation3], %s26
      %s28 = sshll.u32 [#allocation2], 4
      %s29 = int_to_ptr.vmem [resolvable:$true] %s28
      %34 = dma.hbm_to_vmem [thread:$0]  %s0, 128, %s29, [#allocation3], 64, 64, 4
    $region5: #{gnn_forward.1} parent=1 // pred_fallthru
      _
    // Predicated region
    $region6: #{gnn_forward.1} parent=1 // pred_check
      _
    $region7: #{gnn_forward.1} parent=1 // pred_check_branch
      %36 = sbr.rel (0) target = $region9
    $region8: #{gnn_forward.1} parent=1 // pred_region
      _
    $region9: #{gnn_forward.1} parent=1 // pred_fallthru
      _
    // Predicated region
    $region10: #{gnn_forward.1} parent=1 // pred_check
      _
    $region11: #{gnn_forward.1} parent=1 // pred_check_branch
      %38 = sbr.rel (0) target = $region13
    $region12: #{gnn_forward.1} parent=1 // pred_region
      %s40 = ssub.s32 128, 128
      %41 = vsyncadd [#allocation5], %s40
      %s42 = sshll.u32 [#allocation4], 4
      %s43 = int_to_ptr.vmem [resolvable:$true] %s42
      %48 = dma.hbm_to_vmem [thread:$0]  %s2, 128, %s43, [#allocation5], 64, 64, 4
    $region13: #{gnn_forward.1} parent=1 // pred_fallthru
      _
    // Predicated region
    $region14: #{gnn_forward.1} parent=1 // pred_check
      _
    $region15: #{gnn_forward.1} parent=1 // pred_check_branch
      %50 = sbr.rel (0) target = $region17
    $region16: #{gnn_forward.1} parent=1 // pred_region
      _
    $region17: #{gnn_forward.1} parent=1 // pred_fallthru
      _
    // Predicated region
    $region18: #{gnn_forward.1} parent=1 // pred_check
      _
    $region19: #{gnn_forward.1} parent=1 // pred_check_branch
      %52 = sbr.rel (0) target = $region21
    $region20: #{gnn_forward.1} parent=1 // pred_region
      _
    $region21: #{gnn_forward.1} parent=1 // pred_fallthru
      _
    // Predicated region
    $region22: #{gnn_forward.1} parent=1 // pred_check
      _
    $region23: #{gnn_forward.1} parent=1 // pred_check_branch
      %54 = sbr.rel (0) target = $region25
    $region24: #{gnn_forward.1} parent=1 // pred_region
      %s56 = ssub.s32 1024, 1024
      %57 = vsyncadd [#allocation5], %s56
      %s58 = sshll.u32 [#allocation6], 4
      %s59 = int_to_ptr.vmem [resolvable:$true] %s58
      %64 = dma.hbm_to_vmem [thread:$0]  %s5, 1024, %s59, [#allocation5], 64, 64, 4
    $region25: #{gnn_forward.1} parent=1 // pred_fallthru
      _
    // Predicated region
    $region26: #{gnn_forward.1} parent=1 // pred_check
      _
    $region27: #{gnn_forward.1} parent=1 // pred_check_branch
      %66 = sbr.rel (0) target = $region29
    $region28: #{gnn_forward.1} parent=1 // pred_region
      _
    $region29: #{gnn_forward.1} parent=1 // pred_fallthru
      _
    // Predicated region
    $region30: #{gnn_forward.1} parent=1 // pred_check
      _
    $region31: #{gnn_forward.1} parent=1 // pred_check_branch
      %68 = sbr.rel (0) target = $region33
    $region32: #{gnn_forward.1} parent=1 // pred_region
      %s70 = ssub.s32 1024, 1024
      %71 = vsyncadd [#allocation8], %s70
      %s72 = sshll.u32 [#allocation7], 4
      %s73 = int_to_ptr.vmem [resolvable:$true] %s72
      %78 = dma.hbm_to_vmem [thread:$0]  %s7, 1024, %s73, [#allocation8], 64, 64, 4
    $region33: #{gnn_forward.1} parent=1 // pred_fallthru
      _
    // Predicated region
    $region34: #{gnn_forward.1} parent=1 // pred_check
      _
    $region35: #{gnn_forward.1} parent=1 // pred_check_branch
      %80 = sbr.rel (0) target = $region37
    $region36: #{gnn_forward.1} parent=1 // pred_region
      %s82 = ssub.s32 256, 256
      %83 = vsyncadd [#allocation8], %s82
      %s84 = sshll.u32 [#allocation9], 4
      %s85 = int_to_ptr.vmem [resolvable:$true] %s84
      %90 = dma.hbm_to_vmem [thread:$0]  %s8, 256, %s85, [#allocation8], 128, 128, 8
    $region37: #{gnn_forward.1} parent=1 // pred_fallthru
      _
    // Predicated region
    $region38: #{gnn_forward.1} parent=1 // pred_check
      _
    $region39: #{gnn_forward.1} parent=1 // pred_check_branch
      %92 = sbr.rel (0) target = $region41
    $region40: #{gnn_forward.1} parent=1 // pred_region
      %s94 = ssub.s32 1024, 1024
      %95 = vsyncadd [#allocation11], %s94
      %s96 = sshll.u32 [#allocation10], 4
      %s97 = int_to_ptr.vmem [resolvable:$true] %s96
      %102 = dma.hbm_to_vmem [thread:$0]  %s9, 1024, %s97, [#allocation11], 64, 64, 4
    $region41: #{gnn_forward.1} parent=1 // pred_fallthru
      _
    // Predicated region
    $region42: #{gnn_forward.1} parent=1 // pred_check
      _
    $region43: #{gnn_forward.1} parent=1 // pred_check_branch
      %104 = sbr.rel (0) target = $region45
    $region44: #{gnn_forward.1} parent=1 // pred_region
      _
    $region45: #{gnn_forward.1} parent=1 // pred_fallthru
      _
    // Predicated region
    $region46: #{gnn_forward.1} parent=1 // pred_check
      _
    $region47: #{gnn_forward.1} parent=1 // pred_check_branch
      %106 = sbr.rel (0) target = $region49
    $region48: #{gnn_forward.1} parent=1 // pred_region
      %s108 = ssub.s32 1024, 1024
      %109 = vsyncadd [#allocation11], %s108
      %s110 = sshll.u32 [#allocation12], 4
      %s111 = int_to_ptr.vmem [resolvable:$true] %s110
      %116 = dma.hbm_to_vmem [thread:$0]  %s11, 1024, %s111, [#allocation11], 64, 64, 4
    $region49: #{gnn_forward.1} parent=1 // pred_fallthru
      _
    // Predicated region
    $region50: #{gnn_forward.1} parent=1 // pred_check
      _
    $region51: #{gnn_forward.1} parent=1 // pred_check_branch
      %118 = sbr.rel (0) target = $region53
    $region52: #{gnn_forward.1} parent=1 // pred_region
      %s120 = ssub.s32 16, 16
      %121 = vsyncadd [#allocation14], %s120
      %s123 = sshll.u32 [#allocation13], 4
      %s124 = int_to_ptr.vmem [resolvable:$true] %s123
      %126 = dma.hbm_to_vmem [thread:$0]  %s12, 16, %s124, [#allocation14]
    $region53: #{gnn_forward.1} parent=1 // pred_fallthru
      _
    // Predicated region
    $region54: #{gnn_forward.1} parent=1 // pred_check
      _
    $region55: #{gnn_forward.1} parent=1 // pred_check_branch
      %128 = sbr.rel (0) target = $region57
    $region56: #{gnn_forward.1} parent=1 // pred_region
      %129 = dma.done [#allocation3], 128
    $region57: #{gnn_forward.1} parent=1 // pred_fallthru
      _
    // Predicated region
    $region58: #{gnn_forward.1} parent=1 // pred_check
      _
    $region59: #{gnn_forward.1} parent=1 // pred_check_branch
      %131 = sbr.rel (0) target = $region61
    $region60: #{gnn_forward.1} parent=1 // pred_region
      %132 = dma.done [#allocation5], 128
    $region61: #{gnn_forward.1} parent=1 // pred_fallthru
      _
    // Predicated region
    $region62: #{gnn_forward.1} parent=1 // pred_check
      _
    $region63: #{gnn_forward.1} parent=1 // pred_check_branch
      %134 = sbr.rel (0) target = $region65
    $region64: #{gnn_forward.1} parent=1 // pred_region
      %135 = dma.done [#allocation5], 1024
    $region65: #{gnn_forward.1} parent=1 // pred_fallthru
      _
    // Predicated region
    $region66: #{gnn_forward.1} parent=1 // pred_check
      _
    $region67: #{gnn_forward.1} parent=1 // pred_check_branch
      %137 = sbr.rel (0) target = $region69
    $region68: #{gnn_forward.1} parent=1 // pred_region
      %138 = dma.done [#allocation8], 1024
    $region69: #{gnn_forward.1} parent=1 // pred_fallthru
      _
    // Predicated region
    $region70: #{gnn_forward.1} parent=1 // pred_check
      _
    $region71: #{gnn_forward.1} parent=1 // pred_check_branch
      %140 = sbr.rel (0) target = $region73
    $region72: #{gnn_forward.1} parent=1 // pred_region
      %141 = dma.done [#allocation8], 256
    $region73: #{gnn_forward.1} parent=1 // pred_fallthru
      _
    // Predicated region
    $region74: #{gnn_forward.1} parent=1 // pred_check
      _
    $region75: #{gnn_forward.1} parent=1 // pred_check_branch
      %143 = sbr.rel (0) target = $region77
    $region76: #{gnn_forward.1} parent=1 // pred_region
      %144 = dma.done [#allocation11], 1024
    $region77: #{gnn_forward.1} parent=1 // pred_fallthru
      _
    // Predicated region
    $region78: #{gnn_forward.1} parent=1 // pred_check
      _
    $region79: #{gnn_forward.1} parent=1 // pred_check_branch
      %146 = sbr.rel (0) target = $region81
    $region80: #{gnn_forward.1} parent=1 // pred_region
      %147 = dma.done [#allocation11], 1024
    $region81: #{gnn_forward.1} parent=1 // pred_fallthru
      _
    // Predicated region
    $region82: #{gnn_forward.1} parent=1 // pred_check
      _
    $region83: #{gnn_forward.1} parent=1 // pred_check_branch
      %149 = sbr.rel (0) target = $region85
    $region84: #{gnn_forward.1} parent=1 // pred_region
      %150 = dma.done [#allocation14], 16
    $region85: #{gnn_forward.1} parent=1 // pred_fallthru
      _
    %v152 = vld [vmem:[#allocation2] sm:$0xf]
    %v153 = vld [vmem:[#allocation2 + $0x4] sm:$0xf]
    %v154 = vld [vmem:[%s1] sm:$0xf]
    %v155 = vld [vmem:[%s1 + $0x4] sm:$0xf]
    %v158 = vunpack.c.l.b16 %v152
    %v159 = vunpack.c.l.b16 %v153
    %v160 = vpack.c.b16 %v159, %v158
    %v163 = vunpack.c.l.b16 %v154
    %v164 = vunpack.c.l.b16 %v155
    %v165 = vpack.c.b16 %v164, %v163
    %vm167 = vcmask 130048
    %v169 = vsel %vm167, %v160, 0
    %171 = vmatprep.subr.bf16.mxu0 0
    %172 = vmatpush1.bf16.msra.mxu0 %v165
    %173 = vmatprep.subr.bf16.mxu0 0
    %174 = vmatpush1.bf16.msra.mxu0 0
    %175 = vmatprep.subr.bf16.mxu0 0
    %176 = vmatpush1.bf16.msra.mxu0 0
    %177 = vmatprep.subr.bf16.mxu0 0
    %178 = vmatpush1.bf16.msra.mxu0 0
    %179 = vmatprep.subr.bf16.mxu0 0
    %180 = vmatpush1.bf16.msra.mxu0 0
    %181 = vmatprep.subr.bf16.mxu0 0
    %182 = vmatpush1.bf16.msra.mxu0 0
    %183 = vmatprep.subr.bf16.mxu0 0
    %184 = vmatpush1.bf16.msra.mxu0 0
    %185 = vmatprep.subr.bf16.mxu0 0
    %186 = vmatpush1.bf16.msra.mxu0 0
    %187 = vmatprep.subr.bf16.mxu0 0
    %188 = vmatpush1.bf16.msra.mxu0 0
    %189 = vmatprep.subr.bf16.mxu0 0
    %190 = vmatpush1.bf16.msra.mxu0 0
    %191 = vmatprep.subr.bf16.mxu0 0
    %192 = vmatpush1.bf16.msra.mxu0 0
    %193 = vmatprep.subr.bf16.mxu0 0
    %194 = vmatpush1.bf16.msra.mxu0 0
    %195 = vmatprep.subr.bf16.mxu0 0
    %196 = vmatpush1.bf16.msra.mxu0 0
    %197 = vmatprep.subr.bf16.mxu0 0
    %198 = vmatpush1.bf16.msra.mxu0 0
    %199 = vmatprep.subr.bf16.mxu0 0
    %200 = vmatpush1.bf16.msra.mxu0 0
    %201 = vmatprep.subr.bf16.mxu0 0
    %202 = vmatpush1.bf16.msra.mxu0 0
    %203 = vmatprep.mubr.bf16.mxu0 0
    %204 = vmatmul.mubr.bf16.gmra.mrb[0].mxu0 %v169
    %v205 = vpop.f32.mrb[0].mxu0
    %v206 = vadd.f32 0.0, %v205
    %v207 = vpop.f32.mrb[0].mxu0
    %v208 = vpop.f32.mrb[0].mxu0
    %v209 = vadd.f32 0.0, %v208
    %v210 = vpop.f32.mrb[0].mxu0
    %211 = vdwg.mxu0
    %v212 = vpack.c.bf16 %v209, %v206
    %v213 = vld [vmem:[%s3] sm:$0xf]
    %v214 = vld [vmem:[%s3 + $0x4] sm:$0xf]
    %v215 = vld [vmem:[%s3 + $0x8] sm:$0xf]
    %v216 = vld [vmem:[%s3 + $0xc] sm:$0xf]
    %v217 = vld [vmem:[%s3 + $0x10] sm:$0xf]
    %v218 = vld [vmem:[%s3 + $0x14] sm:$0xf]
    %v219 = vld [vmem:[%s3 + $0x18] sm:$0xf]
    %v220 = vld [vmem:[%s3 + $0x1c] sm:$0xf]
    %v221 = vld [vmem:[%s3 + $0x20] sm:$0xf]
    %v222 = vld [vmem:[%s3 + $0x24] sm:$0xf]
    %v223 = vld [vmem:[%s3 + $0x28] sm:$0xf]
    %v224 = vld [vmem:[%s3 + $0x2c] sm:$0xf]
    %v225 = vld [vmem:[%s3 + $0x30] sm:$0xf]
    %v226 = vld [vmem:[%s3 + $0x34] sm:$0xf]
    %v227 = vld [vmem:[%s3 + $0x38] sm:$0xf]
    %v228 = vld [vmem:[%s3 + $0x3c] sm:$0xf]
    %v229 = vld [vmem:[%s4] sm:$0x1]
    %v231 = vlaneseq
    %v232 = vshrl.u32 %v231, 7
    %v233 = vsub.s32 0, %v232
    %v234 = vrot.slane %v229, %v233
    %v252 = vunpack.c.l.b16 %v213
    %v253 = vunpack.c.l.b16 %v214
    %v254 = vunpack.c.l.b16 %v215
    %v255 = vunpack.c.l.b16 %v216
    %v256 = vunpack.c.l.b16 %v217
    %v257 = vunpack.c.l.b16 %v218
    %v258 = vunpack.c.l.b16 %v219
    %v259 = vunpack.c.l.b16 %v220
    %v260 = vunpack.c.l.b16 %v221
    %v261 = vunpack.c.l.b16 %v222
    %v262 = vunpack.c.l.b16 %v223
    %v263 = vunpack.c.l.b16 %v224
    %v264 = vunpack.c.l.b16 %v225
    %v265 = vunpack.c.l.b16 %v226
    %v266 = vunpack.c.l.b16 %v227
    %v267 = vunpack.c.l.b16 %v228
    %v268 = vpack.c.b16 %v253, %v252
    %v269 = vpack.c.b16 %v255, %v254
    %v270 = vpack.c.b16 %v257, %v256
    %v271 = vpack.c.b16 %v259, %v258
    %v272 = vpack.c.b16 %v261, %v260
    %v273 = vpack.c.b16 %v263, %v262
    %v274 = vpack.c.b16 %v265, %v264
    %v275 = vpack.c.b16 %v267, %v266
    %284 = vmatprep.subr.bf16.mxu0 0
    %285 = vmatpush1.bf16.msra.mxu0 %v268
    %286 = vmatprep.subr.bf16.mxu0 0
    %287 = vmatpush1.bf16.msra.mxu0 %v269
    %288 = vmatprep.subr.bf16.mxu0 0
    %289 = vmatpush1.bf16.msra.mxu0 %v270
    %290 = vmatprep.subr.bf16.mxu0 0
    %291 = vmatpush1.bf16.msra.mxu0 %v271
    %292 = vmatprep.subr.bf16.mxu0 0
    %293 = vmatpush1.bf16.msra.mxu0 %v272
    %294 = vmatprep.subr.bf16.mxu0 0
    %295 = vmatpush1.bf16.msra.mxu0 %v273
    %296 = vmatprep.subr.bf16.mxu0 0
    %297 = vmatpush1.bf16.msra.mxu0 %v274
    %298 = vmatprep.subr.bf16.mxu0 0
    %299 = vmatpush1.bf16.msra.mxu0 %v275
    %300 = vmatprep.subr.bf16.mxu0 0
    %301 = vmatpush1.bf16.msra.mxu0 0
    %302 = vmatprep.subr.bf16.mxu0 0
    %303 = vmatpush1.bf16.msra.mxu0 0
    %304 = vmatprep.subr.bf16.mxu0 0
    %305 = vmatpush1.bf16.msra.mxu0 0
    %306 = vmatprep.subr.bf16.mxu0 0
    %307 = vmatpush1.bf16.msra.mxu0 0
    %308 = vmatprep.subr.bf16.mxu0 0
    %309 = vmatpush1.bf16.msra.mxu0 0
    %310 = vmatprep.subr.bf16.mxu0 0
    %311 = vmatpush1.bf16.msra.mxu0 0
    %312 = vmatprep.subr.bf16.mxu0 0
    %313 = vmatpush1.bf16.msra.mxu0 0
    %314 = vmatprep.subr.bf16.mxu0 0
    %315 = vmatpush1.bf16.msra.mxu0 0
    %316 = vmatprep.mubr.bf16.mxu0 0
    %317 = vmatmul.mubr.bf16.gmra.mrb[0].mxu0 %v212
    %v318 = vpop.f32.mrb[0].mxu0
    %v319 = vadd.f32 %v234, %v318
    %v320 = vpop.f32.mrb[0].mxu0
    %v321 = vpop.f32.mrb[0].mxu0
    %v322 = vadd.f32 %v234, %v321
    %v323 = vpop.f32.mrb[0].mxu0
    %324 = vdwg.mxu0
    %v325 = vmax.f32 %v319, 0.0
    %v326 = vmax.f32 %v322, 0.0
    %v327 = vpack.c.bf16 %v326, %v325
    %v328 = vld [vmem:[#allocation6] sm:$0xf]
    %v329 = vld [vmem:[#allocation6 + $0x4] sm:$0xf]
    %v330 = vld [vmem:[#allocation6 + $0x8] sm:$0xf]
    %v331 = vld [vmem:[#allocation6 + $0xc] sm:$0xf]
    %v332 = vld [vmem:[#allocation6 + $0x10] sm:$0xf]
    %v333 = vld [vmem:[#allocation6 + $0x14] sm:$0xf]
    %v334 = vld [vmem:[#allocation6 + $0x18] sm:$0xf]
    %v335 = vld [vmem:[#allocation6 + $0x1c] sm:$0xf]
    %v336 = vld [vmem:[#allocation6 + $0x20] sm:$0xf]
    %v337 = vld [vmem:[#allocation6 + $0x24] sm:$0xf]
    %v338 = vld [vmem:[#allocation6 + $0x28] sm:$0xf]
    %v339 = vld [vmem:[#allocation6 + $0x2c] sm:$0xf]
    %v340 = vld [vmem:[#allocation6 + $0x30] sm:$0xf]
    %v341 = vld [vmem:[#allocation6 + $0x34] sm:$0xf]
    %v342 = vld [vmem:[#allocation6 + $0x38] sm:$0xf]
    %v343 = vld [vmem:[#allocation6 + $0x3c] sm:$0xf]
    %v360 = vunpack.c.l.b16 %v328
    %v361 = vunpack.c.l.b16 %v329
    %v362 = vunpack.c.l.b16 %v330
    %v363 = vunpack.c.l.b16 %v331
    %v364 = vunpack.c.l.b16 %v332
    %v365 = vunpack.c.l.b16 %v333
    %v366 = vunpack.c.l.b16 %v334
    %v367 = vunpack.c.l.b16 %v335
    %v368 = vunpack.c.l.b16 %v336
    %v369 = vunpack.c.l.b16 %v337
    %v370 = vunpack.c.l.b16 %v338
    %v371 = vunpack.c.l.b16 %v339
    %v372 = vunpack.c.l.b16 %v340
    %v373 = vunpack.c.l.b16 %v341
    %v374 = vunpack.c.l.b16 %v342
    %v375 = vunpack.c.l.b16 %v343
    %v376 = vpack.c.b16 %v361, %v360
    %v377 = vpack.c.b16 %v363, %v362
    %v378 = vpack.c.b16 %v365, %v364
    %v379 = vpack.c.b16 %v367, %v366
    %v380 = vpack.c.b16 %v369, %v368
    %v381 = vpack.c.b16 %v371, %v370
    %v382 = vpack.c.b16 %v373, %v372
    %v383 = vpack.c.b16 %v375, %v374
    %392 = vmatprep.subr.bf16.mxu0 0
    %393 = vmatpush1.bf16.msra.mxu0 %v376
    %394 = vmatprep.subr.bf16.mxu0 0
    %395 = vmatpush1.bf16.msra.mxu0 %v377
    %396 = vmatprep.subr.bf16.mxu0 0
    %397 = vmatpush1.bf16.msra.mxu0 %v378
    %398 = vmatprep.subr.bf16.mxu0 0
    %399 = vmatpush1.bf16.msra.mxu0 %v379
    %400 = vmatprep.subr.bf16.mxu0 0
    %401 = vmatpush1.bf16.msra.mxu0 %v380
    %402 = vmatprep.subr.bf16.mxu0 0
    %403 = vmatpush1.bf16.msra.mxu0 %v381
    %404 = vmatprep.subr.bf16.mxu0 0
    %405 = vmatpush1.bf16.msra.mxu0 %v382
    %406 = vmatprep.subr.bf16.mxu0 0
    %407 = vmatpush1.bf16.msra.mxu0 %v383
    %408 = vmatprep.subr.bf16.mxu0 0
    %409 = vmatpush1.bf16.msra.mxu0 0
    %410 = vmatprep.subr.bf16.mxu0 0
    %411 = vmatpush1.bf16.msra.mxu0 0
    %412 = vmatprep.subr.bf16.mxu0 0
    %413 = vmatpush1.bf16.msra.mxu0 0
    %414 = vmatprep.subr.bf16.mxu0 0
    %415 = vmatpush1.bf16.msra.mxu0 0
    %416 = vmatprep.subr.bf16.mxu0 0
    %417 = vmatpush1.bf16.msra.mxu0 0
    %418 = vmatprep.subr.bf16.mxu0 0
    %419 = vmatpush1.bf16.msra.mxu0 0
    %420 = vmatprep.subr.bf16.mxu0 0
    %421 = vmatpush1.bf16.msra.mxu0 0
    %422 = vmatprep.subr.bf16.mxu0 0
    %423 = vmatpush1.bf16.msra.mxu0 0
    %424 = vmatprep.mubr.bf16.mxu0 0
    %425 = vmatmul.mubr.bf16.gmra.mrb[0].mxu0 %v327
    %v426 = vpop.f32.mrb[0].mxu0
    %v427 = vadd.f32 0.0, %v426
    %v428 = vpop.f32.mrb[0].mxu0
    %v429 = vpop.f32.mrb[0].mxu0
    %v430 = vadd.f32 0.0, %v429
    %v431 = vpop.f32.mrb[0].mxu0
    %432 = vdwg.mxu0
    %v433 = vpack.c.bf16 %v430, %v427
    %v434 = vld [vmem:[%s6] sm:$0x1]
    %v436 = vlaneseq
    %v437 = vshrl.u32 %v436, 7
    %v438 = vsub.s32 0, %v437
    %v439 = vrot.slane %v434, %v438
    %441 = vmatprep.subr.bf16.mxu0 0
    %442 = vmatpush1.bf16.msra.mxu0 %v433
    %443 = vmatprep.subr.bf16.mxu0 0
    %444 = vmatpush1.bf16.msra.mxu0 0
    %445 = vmatprep.subr.bf16.mxu0 0
    %446 = vmatpush1.bf16.msra.mxu0 0
    %447 = vmatprep.subr.bf16.mxu0 0
    %448 = vmatpush1.bf16.msra.mxu0 0
    %449 = vmatprep.subr.bf16.mxu0 0
    %450 = vmatpush1.bf16.msra.mxu0 0
    %451 = vmatprep.subr.bf16.mxu0 0
    %452 = vmatpush1.bf16.msra.mxu0 0
    %453 = vmatprep.subr.bf16.mxu0 0
    %454 = vmatpush1.bf16.msra.mxu0 0
    %455 = vmatprep.subr.bf16.mxu0 0
    %456 = vmatpush1.bf16.msra.mxu0 0
    %457 = vmatprep.subr.bf16.mxu0 0
    %458 = vmatpush1.bf16.msra.mxu0 0
    %459 = vmatprep.subr.bf16.mxu0 0
    %460 = vmatpush1.bf16.msra.mxu0 0
    %461 = vmatprep.subr.bf16.mxu0 0
    %462 = vmatpush1.bf16.msra.mxu0 0
    %463 = vmatprep.subr.bf16.mxu0 0
    %464 = vmatpush1.bf16.msra.mxu0 0
    %465 = vmatprep.subr.bf16.mxu0 0
    %466 = vmatpush1.bf16.msra.mxu0 0
    %467 = vmatprep.subr.bf16.mxu0 0
    %468 = vmatpush1.bf16.msra.mxu0 0
    %469 = vmatprep.subr.bf16.mxu0 0
    %470 = vmatpush1.bf16.msra.mxu0 0
    %471 = vmatprep.subr.bf16.mxu0 0
    %472 = vmatpush1.bf16.msra.mxu0 0
    %473 = vmatprep.mubr.bf16.mxu0 0
    %474 = vmatmul.mubr.bf16.gmra.mrb[0].mxu0 %v169
    %v475 = vpop.f32.mrb[0].mxu0
    %v476 = vadd.f32 %v439, %v475
    %v477 = vpop.f32.mrb[0].mxu0
    %v478 = vpop.f32.mrb[0].mxu0
    %v479 = vadd.f32 %v439, %v478
    %v480 = vpop.f32.mrb[0].mxu0
    %481 = vdwg.mxu0
    %v482 = vmax.f32 %v476, 0.0
    %v483 = vmax.f32 %v479, 0.0
    %v484 = vpack.c.bf16 %v483, %v482
    %v485 = vld [vmem:[#allocation7] sm:$0xf]
    %v486 = vld [vmem:[#allocation7 + $0x4] sm:$0xf]
    %v487 = vld [vmem:[#allocation7 + $0x8] sm:$0xf]
    %v488 = vld [vmem:[#allocation7 + $0xc] sm:$0xf]
    %v489 = vld [vmem:[#allocation7 + $0x10] sm:$0xf]
    %v490 = vld [vmem:[#allocation7 + $0x14] sm:$0xf]
    %v491 = vld [vmem:[#allocation7 + $0x18] sm:$0xf]
    %v492 = vld [vmem:[#allocation7 + $0x1c] sm:$0xf]
    %v493 = vld [vmem:[#allocation7 + $0x20] sm:$0xf]
    %v494 = vld [vmem:[#allocation7 + $0x24] sm:$0xf]
    %v495 = vld [vmem:[#allocation7 + $0x28] sm:$0xf]
    %v496 = vld [vmem:[#allocation7 + $0x2c] sm:$0xf]
    %v497 = vld [vmem:[#allocation7 + $0x30] sm:$0xf]
    %v498 = vld [vmem:[#allocation7 + $0x34] sm:$0xf]
    %v499 = vld [vmem:[#allocation7 + $0x38] sm:$0xf]
    %v500 = vld [vmem:[#allocation7 + $0x3c] sm:$0xf]
    %v517 = vunpack.c.l.b16 %v485
    %v518 = vunpack.c.l.b16 %v486
    %v519 = vunpack.c.l.b16 %v487
    %v520 = vunpack.c.l.b16 %v488
    %v521 = vunpack.c.l.b16 %v489
    %v522 = vunpack.c.l.b16 %v490
    %v523 = vunpack.c.l.b16 %v491
    %v524 = vunpack.c.l.b16 %v492
    %v525 = vunpack.c.l.b16 %v493
    %v526 = vunpack.c.l.b16 %v494
    %v527 = vunpack.c.l.b16 %v495
    %v528 = vunpack.c.l.b16 %v496
    %v529 = vunpack.c.l.b16 %v497
    %v530 = vunpack.c.l.b16 %v498
    %v531 = vunpack.c.l.b16 %v499
    %v532 = vunpack.c.l.b16 %v500
    %v533 = vpack.c.b16 %v518, %v517
    %v534 = vpack.c.b16 %v520, %v519
    %v535 = vpack.c.b16 %v522, %v521
    %v536 = vpack.c.b16 %v524, %v523
    %v537 = vpack.c.b16 %v526, %v525
    %v538 = vpack.c.b16 %v528, %v527
    %v539 = vpack.c.b16 %v530, %v529
    %v540 = vpack.c.b16 %v532, %v531
    %549 = vmatprep.subr.bf16.mxu0 0
    %550 = vmatpush1.bf16.msra.mxu0 %v533
    %551 = vmatprep.subr.bf16.mxu0 0
    %552 = vmatpush1.bf16.msra.mxu0 %v534
    %553 = vmatprep.subr.bf16.mxu0 0
    %554 = vmatpush1.bf16.msra.mxu0 %v535
    %555 = vmatprep.subr.bf16.mxu0 0
    %556 = vmatpush1.bf16.msra.mxu0 %v536
    %557 = vmatprep.subr.bf16.mxu0 0
    %558 = vmatpush1.bf16.msra.mxu0 %v537
    %559 = vmatprep.subr.bf16.mxu0 0
    %560 = vmatpush1.bf16.msra.mxu0 %v538
    %561 = vmatprep.subr.bf16.mxu0 0
    %562 = vmatpush1.bf16.msra.mxu0 %v539
    %563 = vmatprep.subr.bf16.mxu0 0
    %564 = vmatpush1.bf16.msra.mxu0 %v540
    %565 = vmatprep.subr.bf16.mxu0 0
    %566 = vmatpush1.bf16.msra.mxu0 0
    %567 = vmatprep.subr.bf16.mxu0 0
    %568 = vmatpush1.bf16.msra.mxu0 0
    %569 = vmatprep.subr.bf16.mxu0 0
    %570 = vmatpush1.bf16.msra.mxu0 0
    %571 = vmatprep.subr.bf16.mxu0 0
    %572 = vmatpush1.bf16.msra.mxu0 0
    %573 = vmatprep.subr.bf16.mxu0 0
    %574 = vmatpush1.bf16.msra.mxu0 0
    %575 = vmatprep.subr.bf16.mxu0 0
    %576 = vmatpush1.bf16.msra.mxu0 0
    %577 = vmatprep.subr.bf16.mxu0 0
    %578 = vmatpush1.bf16.msra.mxu0 0
    %579 = vmatprep.subr.bf16.mxu0 0
    %580 = vmatpush1.bf16.msra.mxu0 0
    %581 = vmatprep.mubr.bf16.mxu0 0
    %582 = vmatmul.mubr.bf16.gmra.mrb[0].mxu0 %v484
    %v583 = vpop.f32.mrb[0].mxu0
    %v584 = vadd.f32 0.0, %v583
    %v585 = vpop.f32.mrb[0].mxu0
    %v586 = vpop.f32.mrb[0].mxu0
    %v587 = vadd.f32 0.0, %v586
    %v588 = vpop.f32.mrb[0].mxu0
    %589 = vdwg.mxu0
    %v590 = vld [vmem:[#allocation4] sm:$0xf]
    %v591 = vld [vmem:[#allocation4 + $0x4] sm:$0xf]
    %v592 = vpack.c.bf16 %v587, %v584
    %v593 = vld [vmem:[#allocation9] sm:$0xff]
    %v594 = vld [vmem:[#allocation9 + $0x8] sm:$0xff]
    %v597 = vunpack.c.l.b16 %v590
    %v598 = vunpack.c.l.b16 %v591
    %v599 = vpack.c.b16 %v598, %v597
    %v601 = vsel %vm167, %v599, 0
    %603 = vmatprep.subr.bf16.mxu0 0
    %604 = vmatpush1.bf16.msra.mxu0 %v592
    %605 = vmatprep.subr.bf16.mxu0 0
    %606 = vmatpush1.bf16.msra.mxu0 0
    %607 = vmatprep.subr.bf16.mxu0 0
    %608 = vmatpush1.bf16.msra.mxu0 0
    %609 = vmatprep.subr.bf16.mxu0 0
    %610 = vmatpush1.bf16.msra.mxu0 0
    %611 = vmatprep.subr.bf16.mxu0 0
    %612 = vmatpush1.bf16.msra.mxu0 0
    %613 = vmatprep.subr.bf16.mxu0 0
    %614 = vmatpush1.bf16.msra.mxu0 0
    %615 = vmatprep.subr.bf16.mxu0 0
    %616 = vmatpush1.bf16.msra.mxu0 0
    %617 = vmatprep.subr.bf16.mxu0 0
    %618 = vmatpush1.bf16.msra.mxu0 0
    %619 = vmatprep.subr.bf16.mxu0 0
    %620 = vmatpush1.bf16.msra.mxu0 0
    %621 = vmatprep.subr.bf16.mxu0 0
    %622 = vmatpush1.bf16.msra.mxu0 0
    %623 = vmatprep.subr.bf16.mxu0 0
    %624 = vmatpush1.bf16.msra.mxu0 0
    %625 = vmatprep.subr.bf16.mxu0 0
    %626 = vmatpush1.bf16.msra.mxu0 0
    %627 = vmatprep.subr.bf16.mxu0 0
    %628 = vmatpush1.bf16.msra.mxu0 0
    %629 = vmatprep.subr.bf16.mxu0 0
    %630 = vmatpush1.bf16.msra.mxu0 0
    %631 = vmatprep.subr.bf16.mxu0 0
    %632 = vmatpush1.bf16.msra.mxu0 0
    %633 = vmatprep.subr.bf16.mxu0 0
    %634 = vmatpush1.bf16.msra.mxu0 0
    %635 = vmatprep.mubr.bf16.mxu0 0
    %636 = vmatmul.mubr.bf16.gmra.mrb[0].mxu0 %v601
    %v637 = vpop.f32.mrb[0].mxu0
    %v638 = vadd.f32 %v593, %v637
    %v639 = vpop.f32.mrb[0].mxu0
    %v640 = vpop.f32.mrb[0].mxu0
    %v641 = vadd.f32 %v594, %v640
    %v642 = vpop.f32.mrb[0].mxu0
    %643 = vdwg.mxu0
    %v644 = vpack.c.bf16 %v641, %v638
    %v645 = vld [vmem:[#allocation10] sm:$0xf]
    %v646 = vld [vmem:[#allocation10 + $0x4] sm:$0xf]
    %v647 = vld [vmem:[#allocation10 + $0x8] sm:$0xf]
    %v648 = vld [vmem:[#allocation10 + $0xc] sm:$0xf]
    %v649 = vld [vmem:[#allocation10 + $0x10] sm:$0xf]
    %v650 = vld [vmem:[#allocation10 + $0x14] sm:$0xf]
    %v651 = vld [vmem:[#allocation10 + $0x18] sm:$0xf]
    %v652 = vld [vmem:[#allocation10 + $0x1c] sm:$0xf]
    %v653 = vld [vmem:[#allocation10 + $0x20] sm:$0xf]
    %v654 = vld [vmem:[#allocation10 + $0x24] sm:$0xf]
    %v655 = vld [vmem:[#allocation10 + $0x28] sm:$0xf]
    %v656 = vld [vmem:[#allocation10 + $0x2c] sm:$0xf]
    %v657 = vld [vmem:[#allocation10 + $0x30] sm:$0xf]
    %v658 = vld [vmem:[#allocation10 + $0x34] sm:$0xf]
    %v659 = vld [vmem:[#allocation10 + $0x38] sm:$0xf]
    %v660 = vld [vmem:[#allocation10 + $0x3c] sm:$0xf]
    %v661 = vld [vmem:[%s10] sm:$0x1]
    %v663 = vlaneseq
    %v664 = vshrl.u32 %v663, 7
    %v665 = vsub.s32 0, %v664
    %v666 = vrot.slane %v661, %v665
    %v684 = vunpack.c.l.b16 %v645
    %v685 = vunpack.c.l.b16 %v646
    %v686 = vunpack.c.l.b16 %v647
    %v687 = vunpack.c.l.b16 %v648
    %v688 = vunpack.c.l.b16 %v649
    %v689 = vunpack.c.l.b16 %v650
    %v690 = vunpack.c.l.b16 %v651
    %v691 = vunpack.c.l.b16 %v652
    %v692 = vunpack.c.l.b16 %v653
    %v693 = vunpack.c.l.b16 %v654
    %v694 = vunpack.c.l.b16 %v655
    %v695 = vunpack.c.l.b16 %v656
    %v696 = vunpack.c.l.b16 %v657
    %v697 = vunpack.c.l.b16 %v658
    %v698 = vunpack.c.l.b16 %v659
    %v699 = vunpack.c.l.b16 %v660
    %v700 = vpack.c.b16 %v685, %v684
    %v701 = vpack.c.b16 %v687, %v686
    %v702 = vpack.c.b16 %v689, %v688
    %v703 = vpack.c.b16 %v691, %v690
    %v704 = vpack.c.b16 %v693, %v692
    %v705 = vpack.c.b16 %v695, %v694
    %v706 = vpack.c.b16 %v697, %v696
    %v707 = vpack.c.b16 %v699, %v698
    %716 = vmatprep.subr.bf16.mxu0 0
    %717 = vmatpush1.bf16.msra.mxu0 %v700
    %718 = vmatprep.subr.bf16.mxu0 0
    %719 = vmatpush1.bf16.msra.mxu0 %v701
    %720 = vmatprep.subr.bf16.mxu0 0
    %721 = vmatpush1.bf16.msra.mxu0 %v702
    %722 = vmatprep.subr.bf16.mxu0 0
    %723 = vmatpush1.bf16.msra.mxu0 %v703
    %724 = vmatprep.subr.bf16.mxu0 0
    %725 = vmatpush1.bf16.msra.mxu0 %v704
    %726 = vmatprep.subr.bf16.mxu0 0
    %727 = vmatpush1.bf16.msra.mxu0 %v705
    %728 = vmatprep.subr.bf16.mxu0 0
    %729 = vmatpush1.bf16.msra.mxu0 %v706
    %730 = vmatprep.subr.bf16.mxu0 0
    %731 = vmatpush1.bf16.msra.mxu0 %v707
    %732 = vmatprep.subr.bf16.mxu0 0
    %733 = vmatpush1.bf16.msra.mxu0 0
    %734 = vmatprep.subr.bf16.mxu0 0
    %735 = vmatpush1.bf16.msra.mxu0 0
    %736 = vmatprep.subr.bf16.mxu0 0
    %737 = vmatpush1.bf16.msra.mxu0 0
    %738 = vmatprep.subr.bf16.mxu0 0
    %739 = vmatpush1.bf16.msra.mxu0 0
    %740 = vmatprep.subr.bf16.mxu0 0
    %741 = vmatpush1.bf16.msra.mxu0 0
    %742 = vmatprep.subr.bf16.mxu0 0
    %743 = vmatpush1.bf16.msra.mxu0 0
    %744 = vmatprep.subr.bf16.mxu0 0
    %745 = vmatpush1.bf16.msra.mxu0 0
    %746 = vmatprep.subr.bf16.mxu0 0
    %747 = vmatpush1.bf16.msra.mxu0 0
    %748 = vmatprep.mubr.bf16.mxu0 0
    %749 = vmatmul.mubr.bf16.gmra.mrb[0].mxu0 %v644
    %v750 = vpop.f32.mrb[0].mxu0
    %v751 = vadd.f32 %v666, %v750
    %v752 = vpop.f32.mrb[0].mxu0
    %v753 = vpop.f32.mrb[0].mxu0
    %v754 = vadd.f32 %v666, %v753
    %v755 = vpop.f32.mrb[0].mxu0
    %756 = vdwg.mxu0
    %v757 = vmax.f32 %v751, 0.0
    %v758 = vmax.f32 %v754, 0.0
    %v759 = vpack.c.bf16 %v758, %v757
    %v760 = vld [vmem:[#allocation12] sm:$0xf]
    %v761 = vld [vmem:[#allocation12 + $0x4] sm:$0xf]
    %v762 = vld [vmem:[#allocation12 + $0x8] sm:$0xf]
    %v763 = vld [vmem:[#allocation12 + $0xc] sm:$0xf]
    %v764 = vld [vmem:[#allocation12 + $0x10] sm:$0xf]
    %v765 = vld [vmem:[#allocation12 + $0x14] sm:$0xf]
    %v766 = vld [vmem:[#allocation12 + $0x18] sm:$0xf]
    %v767 = vld [vmem:[#allocation12 + $0x1c] sm:$0xf]
    %v768 = vld [vmem:[#allocation12 + $0x20] sm:$0xf]
    %v769 = vld [vmem:[#allocation12 + $0x24] sm:$0xf]
    %v770 = vld [vmem:[#allocation12 + $0x28] sm:$0xf]
    %v771 = vld [vmem:[#allocation12 + $0x2c] sm:$0xf]
    %v772 = vld [vmem:[#allocation12 + $0x30] sm:$0xf]
    %v773 = vld [vmem:[#allocation12 + $0x34] sm:$0xf]
    %v774 = vld [vmem:[#allocation12 + $0x38] sm:$0xf]
    %v775 = vld [vmem:[#allocation12 + $0x3c] sm:$0xf]
    %v776 = vld [vmem:[#allocation13] sm:$0x1]
    %v778 = vlaneseq
    %v779 = vshrl.u32 %v778, 7
    %v780 = vsub.s32 0, %v779
    %v781 = vrot.slane %v776, %v780
    %v799 = vunpack.c.l.b16 %v760
    %v800 = vunpack.c.l.b16 %v761
    %v801 = vunpack.c.l.b16 %v762
    %v802 = vunpack.c.l.b16 %v763
    %v803 = vunpack.c.l.b16 %v764
    %v804 = vunpack.c.l.b16 %v765
    %v805 = vunpack.c.l.b16 %v766
    %v806 = vunpack.c.l.b16 %v767
    %v807 = vunpack.c.l.b16 %v768
    %v808 = vunpack.c.l.b16 %v769
    %v809 = vunpack.c.l.b16 %v770
    %v810 = vunpack.c.l.b16 %v771
    %v811 = vunpack.c.l.b16 %v772
    %v812 = vunpack.c.l.b16 %v773
    %v813 = vunpack.c.l.b16 %v774
    %v814 = vunpack.c.l.b16 %v775
    %v815 = vpack.c.b16 %v800, %v799
    %v816 = vpack.c.b16 %v802, %v801
    %v817 = vpack.c.b16 %v804, %v803
    %v818 = vpack.c.b16 %v806, %v805
    %v819 = vpack.c.b16 %v808, %v807
    %v820 = vpack.c.b16 %v810, %v809
    %v821 = vpack.c.b16 %v812, %v811
    %v822 = vpack.c.b16 %v814, %v813
    %831 = vmatprep.subr.bf16.mxu0 0
    %832 = vmatpush1.bf16.msra.mxu0 %v815
    %833 = vmatprep.subr.bf16.mxu0 0
    %834 = vmatpush1.bf16.msra.mxu0 %v816
    %835 = vmatprep.subr.bf16.mxu0 0
    %836 = vmatpush1.bf16.msra.mxu0 %v817
    %837 = vmatprep.subr.bf16.mxu0 0
    %838 = vmatpush1.bf16.msra.mxu0 %v818
    %839 = vmatprep.subr.bf16.mxu0 0
    %840 = vmatpush1.bf16.msra.mxu0 %v819
    %841 = vmatprep.subr.bf16.mxu0 0
    %842 = vmatpush1.bf16.msra.mxu0 %v820
    %843 = vmatprep.subr.bf16.mxu0 0
    %844 = vmatpush1.bf16.msra.mxu0 %v821
    %845 = vmatprep.subr.bf16.mxu0 0
    %846 = vmatpush1.bf16.msra.mxu0 %v822
    %847 = vmatprep.subr.bf16.mxu0 0
    %848 = vmatpush1.bf16.msra.mxu0 0
    %849 = vmatprep.subr.bf16.mxu0 0
    %850 = vmatpush1.bf16.msra.mxu0 0
    %851 = vmatprep.subr.bf16.mxu0 0
    %852 = vmatpush1.bf16.msra.mxu0 0
    %853 = vmatprep.subr.bf16.mxu0 0
    %854 = vmatpush1.bf16.msra.mxu0 0
    %855 = vmatprep.subr.bf16.mxu0 0
    %856 = vmatpush1.bf16.msra.mxu0 0
    %857 = vmatprep.subr.bf16.mxu0 0
    %858 = vmatpush1.bf16.msra.mxu0 0
    %859 = vmatprep.subr.bf16.mxu0 0
    %860 = vmatpush1.bf16.msra.mxu0 0
    %861 = vmatprep.subr.bf16.mxu0 0
    %862 = vmatpush1.bf16.msra.mxu0 0
    %863 = vmatprep.mubr.bf16.mxu0 0
    %864 = vmatmul.mubr.bf16.gmra.mrb[0].mxu0 %v759
    %v865 = vpop.f32.mrb[0].mxu0
    %v866 = vadd.f32 %v781, %v865
    %v867 = vpop.f32.mrb[0].mxu0
    %v868 = vpop.f32.mrb[0].mxu0
    %v869 = vadd.f32 %v781, %v868
    %v870 = vpop.f32.mrb[0].mxu0
    %871 = vdwg.mxu0
    %872 = vst [vmem:[%s13] sm:$0xff] %v866
    %873 = vst [vmem:[%s13 + $0x8] sm:$0xff] %v869
    // Predicated region
    $region86: #{gnn_forward.1} parent=1 // pred_check
      _
    $region87: #{gnn_forward.1} parent=1 // pred_check_branch
      %875 = sbr.rel (0) target = $region89
    $region88: #{gnn_forward.1} parent=1 // pred_region
      _
    $region89: #{gnn_forward.1} parent=1 // pred_fallthru
      _
    // Predicated region
    $region90: #{gnn_forward.1} parent=1 // pred_check
      _
    $region91: #{gnn_forward.1} parent=1 // pred_check_branch
      %877 = sbr.rel (0) target = $region93
    $region92: #{gnn_forward.1} parent=1 // pred_region
      _
    $region93: #{gnn_forward.1} parent=1 // pred_fallthru
      _
    %878 = vsyncpa [#allocation3], 1
    %879 = vsyncpa [#allocation5], 1
    %880 = vsyncpa [#allocation8], 1
    %881 = vsyncpa [#allocation11], 1
    %882 = vsyncpa [#allocation14], 1

</llo_original>
